<compile_context>
chip_gen: v7x
topology: tpu7x:2x2x1
jax: 0.10.0
libtpu: 0.0.40
codegen_flags: <defaults>
</compile_context>

<pallas_src>
import jax
import jax.numpy as jnp
from jax.experimental import pallas as pl
from jax.experimental.pallas import tpu as pltpu


def _make_fused_kernel(num_layers):
    """Kernel processing one batch element; statically unrolls the layer loop."""

    def kernel(a_ref, h_ref, node_ref,
               w1h_ref, w1n_ref, b1_ref,
               w2h_ref, w2n_ref, b2_ref,
               out_ref):
        # a_ref:    (1, N, N)  edge-summed adjacency
        # h_ref:    (1, N, H)  initial hidden
        # node_ref: (1, N, F)  node features
        # w1h/w2h:  (H, U)     hidden-rows of W1/W2
        # w1n/w2n:  (F, U)     node-rows of W1/W2
        # b1/b2:    (1, U)
        # out_ref:  (1, N, U)
        a = a_ref[0]                                   # (N, N)
        node = node_ref[0]                             # (N, F)

        # Node + bias contributions are invariant across layers (node never
        # changes and conv_nets[0]'s params are reused) -> hoist out of loop.
        n1 = jnp.dot(node, w1n_ref[...], preferred_element_type=jnp.float32) + b1_ref[...]
        n2 = jnp.dot(node, w2n_ref[...], preferred_element_type=jnp.float32) + b2_ref[...]

        hidden = h_ref[0].astype(jnp.float32)          # (N, H)
        for _ in range(num_layers):                    # static unroll (len(units) is small)
            # linear1(ann) = hidden@W1[:H] + node@W1[H:] + b1
            h1 = jnp.dot(hidden, w1h_ref[...], preferred_element_type=jnp.float32) + n1
            # sum_e A_e @ h1  ==  A_sum @ h1   (+ linear2(ann))
            out = (jnp.dot(a, h1, preferred_element_type=jnp.float32)
                   + jnp.dot(hidden, w2h_ref[...], preferred_element_type=jnp.float32)
                   + n2)
            hidden = jnp.tanh(out)                     # activation=tanh; dropout(p=0.0)=identity
        out_ref[0] = hidden.astype(out_ref.dtype)

    return kernel


def multi_graph_conv_layers(adjacency, hidden, node, params, units):
    """MultiGraphConvolutionLayers.forward, fused into a single pallas_call.

    Faithful to the PyTorch code: conv_idx is never incremented, so every
    iteration of the loop uses conv_nets[0]'s parameters (params[0]), while the
    loop still runs len(units) times, re-feeding the new hidden tensor.
    """
    # TODO(synk): hidden_tensor=None path (annotations = node only) is not fused here;
    # pass an explicit hidden tensor as in the reference usage.
    assert hidden is not None

    w1, b1, w2, b2 = params[0]                         # conv_idx bug: always params[0]
    num_layers = len(units)

    B, N, _, _E = adjacency.shape
    H = hidden.shape[-1]
    F = node.shape[-1]
    U = w1.shape[-1]
    assert w1.shape[0] == H + F, "in_features must equal hidden_dim + node_dim"
    if num_layers > 1:
        # Required for the (reproduced) weight-reuse across layers to type-check.
        assert U == H, "reusing conv_nets[0] across layers requires units[0] == hidden_dim"

    # Hoisted once (layer-invariant): edge-type slice + sum over the lane axis.
    # No (B,N,N,E)->(B,E,N,N) transpose is ever materialized.
    a_sum = jnp.sum(adjacency[:, :, :, 1:], axis=-1).astype(jnp.float32)   # (B, N, N)

    # Split the linear weights so the hidden/node concat never hits HBM.
    w1h, w1n = w1[:H], w1[H:]
    w2h, w2n = w2[:H], w2[H:]
    b1_2d = b1.reshape(1, U)
    b2_2d = b2.reshape(1, U)

    kernel = _make_fused_kernel(num_layers)

    # NOTE: at large N the (1, N, N) adjacency block should be row-tiled and
    # vmem_limit_bytes raised (v7x has only 64 MiB VMEM / 32 MiB scoped);
    # at these shapes the full per-batch block is tiny and safe.
    return pl.pallas_call(
        kernel,
        out_shape=jax.ShapeDtypeStruct((B, N, U), jnp.float32),
        grid_spec=pltpu.PrefetchScalarGridSpec(
            num_scalar_prefetch=0,
            grid=(B,),
            in_specs=[
                pl.BlockSpec((1, N, N), lambda b: (b, 0, 0)),   # summed adjacency
                pl.BlockSpec((1, N, H), lambda b: (b, 0, 0)),   # initial hidden
                pl.BlockSpec((1, N, F), lambda b: (b, 0, 0)),   # node features
                pl.BlockSpec((H, U), lambda b: (0, 0)),         # W1[:H]
                pl.BlockSpec((F, U), lambda b: (0, 0)),         # W1[H:]
                pl.BlockSpec((1, U), lambda b: (0, 0)),         # b1
                pl.BlockSpec((H, U), lambda b: (0, 0)),         # W2[:H]
                pl.BlockSpec((F, U), lambda b: (0, 0)),         # W2[H:]
                pl.BlockSpec((1, U), lambda b: (0, 0)),         # b2
            ],
            out_specs=pl.BlockSpec((1, N, U), lambda b: (b, 0, 0)),
        ),
        compiler_params=pltpu.CompilerParams(
            dimension_semantics=("parallel",),
        ),
    )(a_sum, hidden, node, w1h, w1n, b1_2d, w2h, w2n, b2_2d)


def _reference(adjacency, hidden, node, params, units):
    """Pure-JAX reference mirroring the PyTorch forward exactly (per-edge matmuls)."""
    w1, b1, w2, b2 = params[0]
    adj = jnp.transpose(adjacency[:, :, :, 1:], (0, 3, 1, 2))        # (B, E-1, N, N)
    for _ in units:
        ann = jnp.concatenate([hidden, node], axis=-1)               # (B, N, D)
        h1 = ann @ w1 + b1                                           # (B, N, U)
        per_edge = jnp.einsum("benm,bmu->benu", adj, h1)             # (B, E-1, N, U)
        out = per_edge.sum(axis=1) + ann @ w2 + b2
        hidden = jnp.tanh(out)
    return hidden


if __name__ == "__main__":
    key = jax.random.PRNGKey(0)

    # Small shapes: batch=2, nodes=16, edge-types=5 (4 used after slicing [1:]),
    # hidden=32, node-features=8, units=(32, 32), in_features = 32 + 8 = 40.
    B, N, E = 2, 16, 5
    hidden_dim, node_dim = 32, 8
    units = (32, 32)
    in_features = hidden_dim + node_dim

    keys = jax.random.split(key, 3 + len(units))
    adjacency = jax.random.uniform(keys[0], (B, N, N, E), dtype=jnp.float32)
    hidden = jax.random.normal(keys[1], (B, N, hidden_dim), dtype=jnp.float32)
    node = jax.random.normal(keys[2], (B, N, node_dim), dtype=jnp.float32)

    # Deterministic synthetic parameters (nn.Linear(in_features, unit) for linear1/linear2).
    params = []
    for i, u in enumerate(units):
        kw = jax.random.split(keys[3 + i], 4)
        w1 = jax.random.normal(kw[0], (in_features, u), dtype=jnp.float32) * 0.1
        b1 = jax.random.normal(kw[1], (u,), dtype=jnp.float32) * 0.1
        w2 = jax.random.normal(kw[2], (in_features, u), dtype=jnp.float32) * 0.1
        b2 = jax.random.normal(kw[3], (u,), dtype=jnp.float32) * 0.1
        params.append((w1, b1, w2, b2))

    out = multi_graph_conv_layers(adjacency, hidden, node, params, units)
    out = jax.block_until_ready(out)
    assert out.shape == (B, N, units[-1]), out.shape
    assert bool(jnp.all(jnp.isfinite(out)))

    ref = _reference(adjacency, hidden, node, params, units)
    max_err = float(jnp.max(jnp.abs(out - ref)))
    assert jnp.allclose(out, ref, atol=1e-3, rtol=1e-3), f"max abs err {max_err}"

    print("KERNEL_OK")
</pallas_src>

<mosaic_0001>
module attributes {stable_mosaic.version = 11 : i64} {
  func.func @kernel(%arg0: i32, %arg1: memref<1x16x16xf32, #tpu.memory_space<vmem>>, %arg2: memref<1x16x32xf32, #tpu.memory_space<vmem>>, %arg3: memref<1x16x8xf32, #tpu.memory_space<vmem>>, %arg4: memref<32x32xf32, #tpu.memory_space<vmem>>, %arg5: memref<8x32xf32, #tpu.memory_space<vmem>>, %arg6: memref<1x32xf32, #tpu.memory_space<vmem>>, %arg7: memref<32x32xf32, #tpu.memory_space<vmem>>, %arg8: memref<8x32xf32, #tpu.memory_space<vmem>>, %arg9: memref<1x32xf32, #tpu.memory_space<vmem>>, %arg10: memref<1x16x32xf32, #tpu.memory_space<vmem>>) attributes {dimension_semantics = [#tpu.dimension_semantics<parallel>], iteration_bounds = array<i64: 2>, scalar_prefetch = 0 : i64, scratch_operands = 0 : i64, tpu.core_type = #tpu.core_type<tc>, window_params = [{transform_indices = @transform_0, window_bounds = array<i64: 1, 16, 16>}, {transform_indices = @transform_1, window_bounds = array<i64: 1, 16, 32>}, {transform_indices = @transform_2, window_bounds = array<i64: 1, 16, 8>}, {pipeline_mode = #tpu.pipeline_mode<synchronous>, transform_indices = @transform_3, window_bounds = array<i64: 32, 32>}, {pipeline_mode = #tpu.pipeline_mode<synchronous>, transform_indices = @transform_4, window_bounds = array<i64: 8, 32>}, {pipeline_mode = #tpu.pipeline_mode<synchronous>, transform_indices = @transform_5, window_bounds = array<i64: 1, 32>}, {pipeline_mode = #tpu.pipeline_mode<synchronous>, transform_indices = @transform_6, window_bounds = array<i64: 32, 32>}, {pipeline_mode = #tpu.pipeline_mode<synchronous>, transform_indices = @transform_7, window_bounds = array<i64: 8, 32>}, {pipeline_mode = #tpu.pipeline_mode<synchronous>, transform_indices = @transform_8, window_bounds = array<i64: 1, 32>}, {transform_indices = @transform_9, window_bounds = array<i64: 1, 16, 32>}]} {
    %c0 = arith.constant 0 : index
    %c0_0 = arith.constant 0 : index
    %c0_1 = arith.constant 0 : index
    %0 = vector.load %arg1[%c0, %c0_0, %c0_1] : memref<1x16x16xf32, #tpu.memory_space<vmem>>, vector<1x16x16xf32>
    %1 = vector.shape_cast %0 : vector<1x16x16xf32> to vector<16x16xf32>
    %c0_2 = arith.constant 0 : index
    %c0_3 = arith.constant 0 : index
    %c0_4 = arith.constant 0 : index
    %2 = vector.load %arg3[%c0_2, %c0_3, %c0_4] : memref<1x16x8xf32, #tpu.memory_space<vmem>>, vector<1x16x8xf32>
    %3 = vector.shape_cast %2 : vector<1x16x8xf32> to vector<16x8xf32>
    %c0_5 = arith.constant 0 : index
    %c0_6 = arith.constant 0 : index
    %4 = vector.load %arg5[%c0_5, %c0_6] : memref<8x32xf32, #tpu.memory_space<vmem>>, vector<8x32xf32>
    %cst = arith.constant dense<0.000000e+00> : vector<16x32xf32>
    %5 = tpu.matmul %3, %4, %cst {dimension_numbers = #tpu.dot_dimension_numbers<[1], [0], [0], [1], [0, 0, 1, 1], [], []>} : vector<16x8xf32>, vector<8x32xf32>, vector<16x32xf32> -> vector<16x32xf32>
    %c0_7 = arith.constant 0 : index
    %c0_8 = arith.constant 0 : index
    %6 = vector.load %arg6[%c0_7, %c0_8] : memref<1x32xf32, #tpu.memory_space<vmem>>, vector<1x32xf32>
    %7 = vector.broadcast %6 : vector<1x32xf32> to vector<16x32xf32>
    %8 = arith.addf %5, %7 : vector<16x32xf32>
    %c0_9 = arith.constant 0 : index
    %c0_10 = arith.constant 0 : index
    %9 = vector.load %arg8[%c0_9, %c0_10] : memref<8x32xf32, #tpu.memory_space<vmem>>, vector<8x32xf32>
    %cst_11 = arith.constant dense<0.000000e+00> : vector<16x32xf32>
    %10 = tpu.matmul %3, %9, %cst_11 {dimension_numbers = #tpu.dot_dimension_numbers<[1], [0], [0], [1], [0, 0, 1, 1], [], []>} : vector<16x8xf32>, vector<8x32xf32>, vector<16x32xf32> -> vector<16x32xf32>
    %c0_12 = arith.constant 0 : index
    %c0_13 = arith.constant 0 : index
    %11 = vector.load %arg9[%c0_12, %c0_13] : memref<1x32xf32, #tpu.memory_space<vmem>>, vector<1x32xf32>
    %12 = vector.broadcast %11 : vector<1x32xf32> to vector<16x32xf32>
    %13 = arith.addf %10, %12 : vector<16x32xf32>
    %c0_14 = arith.constant 0 : index
    %c0_15 = arith.constant 0 : index
    %c0_16 = arith.constant 0 : index
    %14 = vector.load %arg2[%c0_14, %c0_15, %c0_16] : memref<1x16x32xf32, #tpu.memory_space<vmem>>, vector<1x16x32xf32>
    %15 = vector.shape_cast %14 : vector<1x16x32xf32> to vector<16x32xf32>
    %c0_17 = arith.constant 0 : index
    %c0_18 = arith.constant 0 : index
    %16 = vector.load %arg4[%c0_17, %c0_18] : memref<32x32xf32, #tpu.memory_space<vmem>>, vector<32x32xf32>
    %cst_19 = arith.constant dense<0.000000e+00> : vector<16x32xf32>
    %17 = tpu.matmul %15, %16, %cst_19 {dimension_numbers = #tpu.dot_dimension_numbers<[1], [0], [0], [1], [0, 0, 1, 1], [], []>} : vector<16x32xf32>, vector<32x32xf32>, vector<16x32xf32> -> vector<16x32xf32>
    %18 = arith.addf %17, %8 : vector<16x32xf32>
    %cst_20 = arith.constant dense<0.000000e+00> : vector<16x32xf32>
    %19 = tpu.matmul %1, %18, %cst_20 {dimension_numbers = #tpu.dot_dimension_numbers<[1], [0], [0], [1], [0, 0, 1, 1], [], []>} : vector<16x16xf32>, vector<16x32xf32>, vector<16x32xf32> -> vector<16x32xf32>
    %c0_21 = arith.constant 0 : index
    %c0_22 = arith.constant 0 : index
    %20 = vector.load %arg7[%c0_21, %c0_22] : memref<32x32xf32, #tpu.memory_space<vmem>>, vector<32x32xf32>
    %cst_23 = arith.constant dense<0.000000e+00> : vector<16x32xf32>
    %21 = tpu.matmul %15, %20, %cst_23 {dimension_numbers = #tpu.dot_dimension_numbers<[1], [0], [0], [1], [0, 0, 1, 1], [], []>} : vector<16x32xf32>, vector<32x32xf32>, vector<16x32xf32> -> vector<16x32xf32>
    %22 = arith.addf %19, %21 : vector<16x32xf32>
    %23 = arith.addf %22, %13 : vector<16x32xf32>
    %24 = math.tanh %23 : vector<16x32xf32>
    %c0_24 = arith.constant 0 : index
    %c0_25 = arith.constant 0 : index
    %25 = vector.load %arg4[%c0_24, %c0_25] : memref<32x32xf32, #tpu.memory_space<vmem>>, vector<32x32xf32>
    %cst_26 = arith.constant dense<0.000000e+00> : vector<16x32xf32>
    %26 = tpu.matmul %24, %25, %cst_26 {dimension_numbers = #tpu.dot_dimension_numbers<[1], [0], [0], [1], [0, 0, 1, 1], [], []>} : vector<16x32xf32>, vector<32x32xf32>, vector<16x32xf32> -> vector<16x32xf32>
    %27 = arith.addf %26, %8 : vector<16x32xf32>
    %cst_27 = arith.constant dense<0.000000e+00> : vector<16x32xf32>
    %28 = tpu.matmul %1, %27, %cst_27 {dimension_numbers = #tpu.dot_dimension_numbers<[1], [0], [0], [1], [0, 0, 1, 1], [], []>} : vector<16x16xf32>, vector<16x32xf32>, vector<16x32xf32> -> vector<16x32xf32>
    %c0_28 = arith.constant 0 : index
    %c0_29 = arith.constant 0 : index
    %29 = vector.load %arg7[%c0_28, %c0_29] : memref<32x32xf32, #tpu.memory_space<vmem>>, vector<32x32xf32>
    %cst_30 = arith.constant dense<0.000000e+00> : vector<16x32xf32>
    %30 = tpu.matmul %24, %29, %cst_30 {dimension_numbers = #tpu.dot_dimension_numbers<[1], [0], [0], [1], [0, 0, 1, 1], [], []>} : vector<16x32xf32>, vector<32x32xf32>, vector<16x32xf32> -> vector<16x32xf32>
    %31 = arith.addf %28, %30 : vector<16x32xf32>
    %32 = arith.addf %31, %13 : vector<16x32xf32>
    %33 = math.tanh %32 : vector<16x32xf32>
    %c0_31 = arith.constant 0 : index
    %c0_32 = arith.constant 0 : index
    %c0_33 = arith.constant 0 : index
    %34 = vector.load %arg10[%c0_31, %c0_32, %c0_33] : memref<1x16x32xf32, #tpu.memory_space<vmem>>, vector<1x16x32xf32>
    %35 = vector.shape_cast %34 : vector<1x16x32xf32> to vector<16x32xf32>
    %36 = vector.shape_cast %33 : vector<16x32xf32> to vector<1x16x32xf32>
    tpu.vector_store %arg10[%c0_31, %c0_32, %c0_33], %36 {strides = array<i32>} : memref<1x16x32xf32, #tpu.memory_space<vmem>>, vector<1x16x32xf32>,
    return
  }
  func.func @transform_0(%arg0: i32) -> (i32, i32, i32) {
    %c0_i32 = arith.constant 0 : i32
    %c0_i32_0 = arith.constant 0 : i32
    %c0_i32_1 = arith.constant 0 : i32
    return %arg0, %c0_i32, %c0_i32_0 : i32, i32, i32
  }
  func.func @transform_1(%arg0: i32) -> (i32, i32, i32) {
    %c0_i32 = arith.constant 0 : i32
    %c0_i32_0 = arith.constant 0 : i32
    %c0_i32_1 = arith.constant 0 : i32
    return %arg0, %c0_i32, %c0_i32_0 : i32, i32, i32
  }
  func.func @transform_2(%arg0: i32) -> (i32, i32, i32) {
    %c0_i32 = arith.constant 0 : i32
    %c0_i32_0 = arith.constant 0 : i32
    %c0_i32_1 = arith.constant 0 : i32
    return %arg0, %c0_i32, %c0_i32_0 : i32, i32, i32
  }
  func.func @transform_3(%arg0: i32) -> (i32, i32) {
    %c0_i32 = arith.constant 0 : i32
    %c0_i32_0 = arith.constant 0 : i32
    %c0_i32_1 = arith.constant 0 : i32
    return %c0_i32, %c0_i32_0 : i32, i32
  }
  func.func @transform_4(%arg0: i32) -> (i32, i32) {
    %c0_i32 = arith.constant 0 : i32
    %c0_i32_0 = arith.constant 0 : i32
    %c0_i32_1 = arith.constant 0 : i32
    return %c0_i32, %c0_i32_0 : i32, i32
  }
  func.func @transform_5(%arg0: i32) -> (i32, i32) {
    %c0_i32 = arith.constant 0 : i32
    %c0_i32_0 = arith.constant 0 : i32
    %c0_i32_1 = arith.constant 0 : i32
    return %c0_i32, %c0_i32_0 : i32, i32
  }
  func.func @transform_6(%arg0: i32) -> (i32, i32) {
    %c0_i32 = arith.constant 0 : i32
    %c0_i32_0 = arith.constant 0 : i32
    %c0_i32_1 = arith.constant 0 : i32
    return %c0_i32, %c0_i32_0 : i32, i32
  }
  func.func @transform_7(%arg0: i32) -> (i32, i32) {
    %c0_i32 = arith.constant 0 : i32
    %c0_i32_0 = arith.constant 0 : i32
    %c0_i32_1 = arith.constant 0 : i32
    return %c0_i32, %c0_i32_0 : i32, i32
  }
  func.func @transform_8(%arg0: i32) -> (i32, i32) {
    %c0_i32 = arith.constant 0 : i32
    %c0_i32_0 = arith.constant 0 : i32
    %c0_i32_1 = arith.constant 0 : i32
    return %c0_i32, %c0_i32_0 : i32, i32
  }
  func.func @transform_9(%arg0: i32) -> (i32, i32, i32) {
    %c0_i32 = arith.constant 0 : i32
    %c0_i32_0 = arith.constant 0 : i32
    %c0_i32_1 = arith.constant 0 : i32
    return %arg0, %c0_i32, %c0_i32_0 : i32, i32, i32
  }
}

</mosaic_0001>

<llo_original>
// kernel: tpu_custom_call.1
$region0: #{tpu_custom_call.1}
  #allocation0 [shape = 'u32[]', space=smem, size = 0x4, offset = 0x4, fixed_abs, tag = 'smem constant byte address 0x4 - core index']
  #allocation1 [shape = 'u32[144,128]{1,0:T(1,128)}', space=vmem, size = 0x12000, scoped, tag = 'internal scratch']
  %s0 = inlined_call_operand.vmem [shape: f32[2,16,16], index: 0, kind: input, shape index: {}]
  %s1 = inlined_call_operand.hbm [shape: f32[2,16,32], index: 1, kind: input, shape index: {}]
  %s2 = inlined_call_operand.vmem [shape: f32[2,16,8], index: 2, kind: input, shape index: {}]
  %s3 = inlined_call_operand.hbm [shape: f32[32,32], index: 3, kind: input, shape index: {}]
  %s4 = inlined_call_operand.hbm [shape: f32[8,32], index: 4, kind: input, shape index: {}]
  %s5 = inlined_call_operand.vmem [shape: f32[1,32], index: 5, kind: input, shape index: {}]
  %s6 = inlined_call_operand.vmem [shape: f32[32,32], index: 6, kind: input, shape index: {}]
  %s7 = inlined_call_operand.vmem [shape: f32[8,32], index: 7, kind: input, shape index: {}]
  %s8 = inlined_call_operand.vmem [shape: f32[1,32], index: 8, kind: input, shape index: {}]
  %s9 = inlined_call_operand.hbm [shape: f32[2,16,32], index: 9, kind: output, shape index: {}]
  %s10 = sld [smem:[#allocation0]]
  $region81: #{tpu_custom_call.1} parent=0
    _
  %s12 = ssub.s32 1, %s10
  %s13 = scalar_select 0, %s12, %s10
  $region1: #{tpu_custom_call.1} parent=0
    #allocation2 [shape = 'u8[16384]{0}', space=vmem, size = 0x4000, scoped, tag = 'input window, operand 1']
    #allocation3 [shape = 's32[2]{0}', space=sflag, size = 0x8, scoped, tag = 'scoped memory for tpu_custom_call.1']
    #allocation4 [shape = 's32[2]{0}', space=sflag, size = 0x8, scoped, tag = 'scoped memory for tpu_custom_call.1']
    #allocation5 [shape = 'u8[16384]{0}', space=vmem, size = 0x4000, scoped, tag = 'input window, operand 3, single buffered']
    #allocation6 [shape = 's32[1]{0}', space=sflag, size = 0x4, scoped, tag = 'scoped memory for tpu_custom_call.1']
    #allocation7 [shape = 'u8[4096]{0}', space=vmem, size = 0x1000, scoped, tag = 'input window, operand 4, single buffered']
    #allocation8 [shape = 'u8[16384]{0}', space=vmem, size = 0x4000, scoped, tag = 'output window, operand 0']
    %14 = vsyncpa [#allocation3], 0
    %s15 = scalar_lea.sflag [#allocation3], 1
    %16 = vsyncpa %s15, 0
    %17 = vsyncpa [#allocation6], 0
    %18 = vsyncpa [#allocation4], 0
    %s19 = scalar_lea.sflag [#allocation4], 1
    %20 = vsyncpa %s19, 0
    loop: start=0, step=1, limit=4
    $region2: #{tpu_custom_call.1} parent=1 // loop_pre_header
      _
    $region3: #{tpu_custom_call.1} parent=1 // loop_header
      %s22 = sphi 0, %s26
      %p23 = scmp.ge.s32.totalorder %s22, 4
      %s32 = sphi 0, %s34
      %s35 = sphi 0, %s32
      %s36 = sphi 0, %s35
      %s52 = sphi 0, %s36
      %s58 = sphi 0, %s60
      %s61 = sphi 0, %s58
      %s62 = sphi 0, %s61
      %s78 = sphi 0, %s62
      %s84 = sphi 0, %s86
      %s87 = sphi 0, %s84
      %s88 = sphi 0, %s87
      %s104 = sphi 0, %s88
      %s108 = sphi 0, %s108
      %s110 = sphi 0, %s108
      %s111 = sphi 0, %s110
      %s125 = sphi 0, %s111
      %s129 = sphi 0, %s129
      %s131 = sphi 0, %s129
      %s132 = sphi 0, %s131
      %s146 = sphi 0, %s132
      %s150 = sphi 0, %s150
      %s152 = sphi 0, %s150
      %s153 = sphi 0, %s152
      %s167 = sphi 0, %s153
      %s171 = sphi 0, %s171
      %s173 = sphi 0, %s171
      %s174 = sphi 0, %s173
      %s188 = sphi 0, %s174
      %s192 = sphi 0, %s192
      %s194 = sphi 0, %s192
      %s195 = sphi 0, %s194
      %s209 = sphi 0, %s195
      %s213 = sphi 0, %s213
      %s215 = sphi 0, %s213
      %s216 = sphi 0, %s215
      %s230 = sphi 0, %s216
      %s236 = sphi 0, %s238
      %s239 = sphi 0, %s236
      %s240 = sphi 0, %s239
      %s256 = sphi 0, %s240
    $region4: #{tpu_custom_call.1} parent=1 // loop_header_branch
      %25 = sbr.rel (%p23) target = $region8
    $region5: #{tpu_custom_call.1} parent=1 // loop_body
      %s27 = ssub.s32 %s22, 1
      %s28 = ssub.s32 %s22, 2
      %s29 = sadd.s32 %s22, 1
      %s30 = ssub.s32 %s22, %s29
      %p31 = scmp.eq.s32.totalorder %s30, 0
      %s33 = sadd.s32 %s32, 1
      %s34 = scalar_select %p31, %s32, %s33
      %p37 = pneg %p31
      %p38 = scmp.eq.s32.totalorder %s22, 1
      %p39 = por %p37, %p38
      %p40 = scmp.ne.s32.totalorder %s32, %s35
      %p41 = scmp.eq.s32.totalorder %s22, 0
      %p42 = por %p40, %p41
      %p43 = scmp.ne.s32.totalorder %s32, %s35
      %p44 = scmp.eq.s32.totalorder %s27, 1
      %p45 = por %p43, %p44
      %p46 = scmp.ne.s32.totalorder %s35, %s36
      %p47 = scmp.eq.s32.totalorder %s27, 0
      %p48 = por %p46, %p47
      %p49 = scmp.ne.s32.totalorder %s35, %s36
      %p50 = scmp.eq.s32.totalorder %s28, 1
      %p51 = por %p49, %p50
      %p53 = scmp.ne.s32.totalorder %s36, %s52
      %p54 = scmp.eq.s32.totalorder %s28, 0
      %p55 = por %p53, %p54
      %s56 = ssub.s32 %s22, %s29
      %p57 = scmp.eq.s32.totalorder %s56, 0
      %s59 = sadd.s32 %s58, 1
      %s60 = scalar_select %p57, %s58, %s59
      %p63 = pneg %p57
      %p64 = scmp.eq.s32.totalorder %s22, 1
      %p65 = por %p63, %p64
      %p66 = scmp.ne.s32.totalorder %s58, %s61
      %p67 = scmp.eq.s32.totalorder %s22, 0
      %p68 = por %p66, %p67
      %p69 = scmp.ne.s32.totalorder %s58, %s61
      %p70 = scmp.eq.s32.totalorder %s27, 1
      %p71 = por %p69, %p70
      %p72 = scmp.ne.s32.totalorder %s61, %s62
      %p73 = scmp.eq.s32.totalorder %s27, 0
      %p74 = por %p72, %p73
      %p75 = scmp.ne.s32.totalorder %s61, %s62
      %p76 = scmp.eq.s32.totalorder %s28, 1
      %p77 = por %p75, %p76
      %p79 = scmp.ne.s32.totalorder %s62, %s78
      %p80 = scmp.eq.s32.totalorder %s28, 0
      %p81 = por %p79, %p80
      %s82 = ssub.s32 %s22, %s29
      %p83 = scmp.eq.s32.totalorder %s82, 0
      %s85 = sadd.s32 %s84, 1
      %s86 = scalar_select %p83, %s84, %s85
      %p89 = pneg %p83
      %p90 = scmp.eq.s32.totalorder %s22, 1
      %p91 = por %p89, %p90
      %p92 = scmp.ne.s32.totalorder %s84, %s87
      %p93 = scmp.eq.s32.totalorder %s22, 0
      %p94 = por %p92, %p93
      %p95 = scmp.ne.s32.totalorder %s84, %s87
      %p96 = scmp.eq.s32.totalorder %s27, 1
      %p97 = por %p95, %p96
      %p98 = scmp.ne.s32.totalorder %s87, %s88
      %p99 = scmp.eq.s32.totalorder %s27, 0
      %p100 = por %p98, %p99
      %p101 = scmp.ne.s32.totalorder %s87, %s88
      %p102 = scmp.eq.s32.totalorder %s28, 1
      %p103 = por %p101, %p102
      %p105 = scmp.ne.s32.totalorder %s88, %s104
      %p106 = scmp.eq.s32.totalorder %s28, 0
      %p107 = por %p105, %p106
      %s109 = sadd.s32 %s108, 1
      %p112 = scmp.eq.s32.totalorder %s22, 1
      %p113 = scmp.ne.s32.totalorder %s108, %s110
      %p114 = scmp.eq.s32.totalorder %s22, 0
      %p115 = por %p113, %p114
      %p116 = scmp.ne.s32.totalorder %s108, %s110
      %p117 = scmp.eq.s32.totalorder %s27, 1
      %p118 = por %p116, %p117
      %p119 = scmp.ne.s32.totalorder %s110, %s111
      %p120 = scmp.eq.s32.totalorder %s27, 0
      %p121 = por %p119, %p120
      %p122 = scmp.ne.s32.totalorder %s110, %s111
      %p123 = scmp.eq.s32.totalorder %s28, 1
      %p124 = por %p122, %p123
      %p126 = scmp.ne.s32.totalorder %s111, %s125
      %p127 = scmp.eq.s32.totalorder %s28, 0
      %p128 = por %p126, %p127
      %s130 = sadd.s32 %s129, 1
      %p133 = scmp.eq.s32.totalorder %s22, 1
      %p134 = scmp.ne.s32.totalorder %s129, %s131
      %p135 = scmp.eq.s32.totalorder %s22, 0
      %p136 = por %p134, %p135
      %p137 = scmp.ne.s32.totalorder %s129, %s131
      %p138 = scmp.eq.s32.totalorder %s27, 1
      %p139 = por %p137, %p138
      %p140 = scmp.ne.s32.totalorder %s131, %s132
      %p141 = scmp.eq.s32.totalorder %s27, 0
      %p142 = por %p140, %p141
      %p143 = scmp.ne.s32.totalorder %s131, %s132
      %p144 = scmp.eq.s32.totalorder %s28, 1
      %p145 = por %p143, %p144
      %p147 = scmp.ne.s32.totalorder %s132, %s146
      %p148 = scmp.eq.s32.totalorder %s28, 0
      %p149 = por %p147, %p148
      %s151 = sadd.s32 %s150, 1
      %p154 = scmp.eq.s32.totalorder %s22, 1
      %p155 = scmp.ne.s32.totalorder %s150, %s152
      %p156 = scmp.eq.s32.totalorder %s22, 0
      %p157 = por %p155, %p156
      %p158 = scmp.ne.s32.totalorder %s150, %s152
      %p159 = scmp.eq.s32.totalorder %s27, 1
      %p160 = por %p158, %p159
      %p161 = scmp.ne.s32.totalorder %s152, %s153
      %p162 = scmp.eq.s32.totalorder %s27, 0
      %p163 = por %p161, %p162
      %p164 = scmp.ne.s32.totalorder %s152, %s153
      %p165 = scmp.eq.s32.totalorder %s28, 1
      %p166 = por %p164, %p165
      %p168 = scmp.ne.s32.totalorder %s153, %s167
      %p169 = scmp.eq.s32.totalorder %s28, 0
      %p170 = por %p168, %p169
      %s172 = sadd.s32 %s171, 1
      %p175 = scmp.eq.s32.totalorder %s22, 1
      %p176 = scmp.ne.s32.totalorder %s171, %s173
      %p177 = scmp.eq.s32.totalorder %s22, 0
      %p178 = por %p176, %p177
      %p179 = scmp.ne.s32.totalorder %s171, %s173
      %p180 = scmp.eq.s32.totalorder %s27, 1
      %p181 = por %p179, %p180
      %p182 = scmp.ne.s32.totalorder %s173, %s174
      %p183 = scmp.eq.s32.totalorder %s27, 0
      %p184 = por %p182, %p183
      %p185 = scmp.ne.s32.totalorder %s173, %s174
      %p186 = scmp.eq.s32.totalorder %s28, 1
      %p187 = por %p185, %p186
      %p189 = scmp.ne.s32.totalorder %s174, %s188
      %p190 = scmp.eq.s32.totalorder %s28, 0
      %p191 = por %p189, %p190
      %s193 = sadd.s32 %s192, 1
      %p196 = scmp.eq.s32.totalorder %s22, 1
      %p197 = scmp.ne.s32.totalorder %s192, %s194
      %p198 = scmp.eq.s32.totalorder %s22, 0
      %p199 = por %p197, %p198
      %p200 = scmp.ne.s32.totalorder %s192, %s194
      %p201 = scmp.eq.s32.totalorder %s27, 1
      %p202 = por %p200, %p201
      %p203 = scmp.ne.s32.totalorder %s194, %s195
      %p204 = scmp.eq.s32.totalorder %s27, 0
      %p205 = por %p203, %p204
      %p206 = scmp.ne.s32.totalorder %s194, %s195
      %p207 = scmp.eq.s32.totalorder %s28, 1
      %p208 = por %p206, %p207
      %p210 = scmp.ne.s32.totalorder %s195, %s209
      %p211 = scmp.eq.s32.totalorder %s28, 0
      %p212 = por %p210, %p211
      %s214 = sadd.s32 %s213, 1
      %p217 = scmp.eq.s32.totalorder %s22, 1
      %p218 = scmp.ne.s32.totalorder %s213, %s215
      %p219 = scmp.eq.s32.totalorder %s22, 0
      %p220 = por %p218, %p219
      %p221 = scmp.ne.s32.totalorder %s213, %s215
      %p222 = scmp.eq.s32.totalorder %s27, 1
      %p223 = por %p221, %p222
      %p224 = scmp.ne.s32.totalorder %s215, %s216
      %p225 = scmp.eq.s32.totalorder %s27, 0
      %p226 = por %p224, %p225
      %p227 = scmp.ne.s32.totalorder %s215, %s216
      %p228 = scmp.eq.s32.totalorder %s28, 1
      %p229 = por %p227, %p228
      %p231 = scmp.ne.s32.totalorder %s216, %s230
      %p232 = scmp.eq.s32.totalorder %s28, 0
      %p233 = por %p231, %p232
      %s234 = ssub.s32 %s22, %s29
      %p235 = scmp.eq.s32.totalorder %s234, 0
      %s237 = sadd.s32 %s236, 1
      %s238 = scalar_select %p235, %s236, %s237
      %p241 = pneg %p235
      %p242 = scmp.eq.s32.totalorder %s22, 1
      %p243 = por %p241, %p242
      %p244 = scmp.ne.s32.totalorder %s236, %s239
      %p245 = scmp.eq.s32.totalorder %s22, 0
      %p246 = por %p244, %p245
      %p247 = scmp.ne.s32.totalorder %s236, %s239
      %p248 = scmp.eq.s32.totalorder %s27, 1
      %p249 = por %p247, %p248
      %p250 = scmp.ne.s32.totalorder %s239, %s240
      %p251 = scmp.eq.s32.totalorder %s27, 0
      %p252 = por %p250, %p251
      %p253 = scmp.ne.s32.totalorder %s239, %s240
      %p254 = scmp.eq.s32.totalorder %s28, 1
      %p255 = por %p253, %p254
      %p257 = scmp.ne.s32.totalorder %s240, %s256
      %p258 = scmp.eq.s32.totalorder %s28, 0
      %p259 = por %p257, %p258
      %p260 = scmp.le.s32.totalorder 1, %s22
      %p261 = scmp.lt.s32.totalorder %s22, 3
      %p262 = pnand %p260, %p261
      %p263 = pneg %p262
      // Predicated region
      $region9: #{tpu_custom_call.1} parent=5 // pred_check
        _
      $region10: #{tpu_custom_call.1} parent=5 // pred_check_branch
        %265 = sbr.rel (%p262) target = $region12
      $region11: #{tpu_custom_call.1} parent=5 // pred_region
        %s266 = ssub.s32 %s22, 1
        // Predicated region
        $region13: #{tpu_custom_call.1} parent=11 // pred_check
          %p267 = pneg %p121
        $region14: #{tpu_custom_call.1} parent=11 // pred_check_branch
          %269 = sbr.rel (%p267) target = $region16
        $region15: #{tpu_custom_call.1} parent=11 // pred_region
          %s271 = ssub.s32 512, 512
          %272 = vsyncadd [#allocation6], %s271
          %s273 = sshll.u32 [#allocation5], 4
          %s274 = int_to_ptr.vmem [resolvable:$true] %s273
          %279 = dma.hbm_to_vmem [thread:$0]  %s3, 512, %s274, [#allocation6], 128, 128, 8
        $region16: #{tpu_custom_call.1} parent=11 // pred_fallthru
          _
        // Predicated region
        $region17: #{tpu_custom_call.1} parent=11 // pred_check
          %p280 = pneg %p142
        $region18: #{tpu_custom_call.1} parent=11 // pred_check_branch
          %282 = sbr.rel (%p280) target = $region20
        $region19: #{tpu_custom_call.1} parent=11 // pred_region
          %s284 = ssub.s32 128, 128
          %285 = vsyncadd [#allocation6], %s284
          %s287 = sshll.u32 [#allocation7], 4
          %s288 = int_to_ptr.vmem [resolvable:$true] %s287
          %290 = dma.hbm_to_vmem [thread:$0]  %s4, 128, %s288, [#allocation6]
        $region20: #{tpu_custom_call.1} parent=11 // pred_fallthru
          _
        // Predicated region
        $region21: #{tpu_custom_call.1} parent=11 // pred_check
          %p291 = pneg %p163
        $region22: #{tpu_custom_call.1} parent=11 // pred_check_branch
          %293 = sbr.rel (%p291) target = $region24
        $region23: #{tpu_custom_call.1} parent=11 // pred_region
          _
        $region24: #{tpu_custom_call.1} parent=11 // pred_fallthru
          _
        // Predicated region
        $region25: #{tpu_custom_call.1} parent=11 // pred_check
          %p294 = pneg %p184
        $region26: #{tpu_custom_call.1} parent=11 // pred_check_branch
          %296 = sbr.rel (%p294) target = $region28
        $region27: #{tpu_custom_call.1} parent=11 // pred_region
          _
        $region28: #{tpu_custom_call.1} parent=11 // pred_fallthru
          _
        // Predicated region
        $region29: #{tpu_custom_call.1} parent=11 // pred_check
          %p297 = pneg %p205
        $region30: #{tpu_custom_call.1} parent=11 // pred_check_branch
          %299 = sbr.rel (%p297) target = $region32
        $region31: #{tpu_custom_call.1} parent=11 // pred_region
          _
        $region32: #{tpu_custom_call.1} parent=11 // pred_fallthru
          _
        // Predicated region
        $region33: #{tpu_custom_call.1} parent=11 // pred_check
          %p300 = pneg %p226
        $region34: #{tpu_custom_call.1} parent=11 // pred_check_branch
          %302 = sbr.rel (%p300) target = $region36
        $region35: #{tpu_custom_call.1} parent=11 // pred_region
          _
        $region36: #{tpu_custom_call.1} parent=11 // pred_fallthru
          _
      $region12: #{tpu_custom_call.1} parent=5 // pred_fallthru
        _
      %p303 = scmp.lt.s32.totalorder %s22, 2
      // Predicated region
      $region37: #{tpu_custom_call.1} parent=5 // pred_check
        %p304 = pneg %p303
      $region38: #{tpu_custom_call.1} parent=5 // pred_check_branch
        %306 = sbr.rel (%p304) target = $region40
      $region39: #{tpu_custom_call.1} parent=5 // pred_region
        // Predicated region
        $region41: #{tpu_custom_call.1} parent=39 // pred_check
          %p307 = pneg %p42
        $region42: #{tpu_custom_call.1} parent=39 // pred_check_branch
          %309 = sbr.rel (%p307) target = $region44
        $region43: #{tpu_custom_call.1} parent=39 // pred_region
          %p310 = scmp.lt.s32.totalorder %s22, 1
          %s311 = scalar_select %p310, %s22, 1
          %s312 = smul.addr %s311, 2
          %s313 = smul.addr %s312, 8
          %s314 = scalar_lea.vmem %s0, %s313
        $region44: #{tpu_custom_call.1} parent=39 // pred_fallthru
          _
        // Predicated region
        $region45: #{tpu_custom_call.1} parent=39 // pred_check
          %p315 = pneg %p68
        $region46: #{tpu_custom_call.1} parent=39 // pred_check_branch
          %317 = sbr.rel (%p315) target = $region48
        $region47: #{tpu_custom_call.1} parent=39 // pred_region
          %s318 = sand.u32 %s58, 1
          %s319 = scalar_lea.sflag [#allocation3], %s318
          %s320 = sand.u32 %s58, 1
          %s321 = smul.addr %s320, 16
          %s322 = scalar_lea.vmem [#allocation2], %s321
          %s324 = ssub.s32 256, 256
          %325 = vsyncadd %s319, %s324
          %s326 = smul.addr %s22, 2
          %s327 = smul.addr %s326, 128
          %s328 = scalar_lea.hbm %s1, %s327
          %s329 = sshll.u32 %s322, 4
          %s330 = int_to_ptr.vmem [resolvable:$true] %s329
          %335 = dma.hbm_to_vmem [thread:$0]  %s328, 256, %s330, %s319, 128, 128, 8
        $region48: #{tpu_custom_call.1} parent=39 // pred_fallthru
          _
        // Predicated region
        $region49: #{tpu_custom_call.1} parent=39 // pred_check
          %p336 = pneg %p94
        $region50: #{tpu_custom_call.1} parent=39 // pred_check_branch
          %338 = sbr.rel (%p336) target = $region52
        $region51: #{tpu_custom_call.1} parent=39 // pred_region
          %p339 = scmp.lt.s32.totalorder %s22, 1
          %s340 = scalar_select %p339, %s22, 1
          %s341 = smul.addr %s340, 2
          %s342 = smul.addr %s341, 8
          %s343 = scalar_lea.vmem %s2, %s342
        $region52: #{tpu_custom_call.1} parent=39 // pred_fallthru
          _
      $region40: #{tpu_custom_call.1} parent=5 // pred_fallthru
        _
      %p344 = scmp.le.s32.totalorder 1, %s22
      %p345 = scmp.lt.s32.totalorder %s22, 3
      %p346 = pnand %p344, %p345
      %p347 = pneg %p346
      // Predicated region
      $region53: #{tpu_custom_call.1} parent=5 // pred_check
        _
      $region54: #{tpu_custom_call.1} parent=5 // pred_check_branch
        %349 = sbr.rel (%p346) target = $region56
      $region55: #{tpu_custom_call.1} parent=5 // pred_region
        %s350 = ssub.s32 %s22, 1
        %s351 = sand.u32 %s61, 1
        %s352 = scalar_lea.sflag [#allocation3], %s351
        %s353 = sand.u32 %s61, 1
        %s354 = smul.addr %s353, 16
        %s355 = scalar_lea.vmem [#allocation2], %s354
        // Predicated region
        $region57: #{tpu_custom_call.1} parent=55 // pred_check
          %p356 = pneg %p74
        $region58: #{tpu_custom_call.1} parent=55 // pred_check_branch
          %358 = sbr.rel (%p356) target = $region60
        $region59: #{tpu_custom_call.1} parent=55 // pred_region
          %359 = dma.done %s352, 256
        $region60: #{tpu_custom_call.1} parent=55 // pred_fallthru
          _
        // Predicated region
        $region61: #{tpu_custom_call.1} parent=55 // pred_check
          %p360 = pneg %p121
        $region62: #{tpu_custom_call.1} parent=55 // pred_check_branch
          %362 = sbr.rel (%p360) target = $region64
        $region63: #{tpu_custom_call.1} parent=55 // pred_region
          %363 = dma.done [#allocation6], 512
        $region64: #{tpu_custom_call.1} parent=55 // pred_fallthru
          _
        // Predicated region
        $region65: #{tpu_custom_call.1} parent=55 // pred_check
          %p364 = pneg %p142
        $region66: #{tpu_custom_call.1} parent=55 // pred_check_branch
          %366 = sbr.rel (%p364) target = $region68
        $region67: #{tpu_custom_call.1} parent=55 // pred_region
          %367 = dma.done [#allocation6], 128
        $region68: #{tpu_custom_call.1} parent=55 // pred_fallthru
          _
        %p368 = scmp.lt.s32.totalorder %s27, 1
        %s369 = scalar_select %p368, %s27, 1
        %s370 = smul.addr %s369, 2
        %s371 = smul.addr %s370, 8
        %s372 = scalar_lea.vmem %s0, %s371
        %p373 = pneg %p48
        %p374 = pneg %p45
        %s375 = sand.u32 %s61, 1
        %s376 = scalar_lea.sflag [#allocation3], %s375
        %s377 = sand.u32 %s61, 1
        %s378 = smul.addr %s377, 16
        %s379 = scalar_lea.vmem [#allocation2], %s378
        %p380 = pneg %p74
        %p381 = pneg %p71
        %p382 = scmp.lt.s32.totalorder %s27, 1
        %s383 = scalar_select %p382, %s27, 1
        %s384 = smul.addr %s383, 2
        %s385 = smul.addr %s384, 8
        %s386 = scalar_lea.vmem %s2, %s385
        %p387 = pneg %p100
        %p388 = pneg %p97
        %p389 = pneg %p121
        %p390 = pneg %p118
        %p391 = pneg %p142
        %p392 = pneg %p139
        %p393 = pneg %p163
        %p394 = pneg %p160
        %p395 = pneg %p184
        %p396 = pneg %p181
        %p397 = pneg %p205
        %p398 = pneg %p202
        %p399 = pneg %p226
        %p400 = pneg %p223
        %p401 = pneg %p252
        %p402 = pneg %p249
        %s403 = sand.u32 %s239, 1
        %s404 = scalar_lea.sflag [#allocation4], %s403
        %s405 = sand.u32 %s239, 1
        %s406 = smul.addr %s405, 16
        %s407 = scalar_lea.vmem [#allocation8], %s406
        %p408 = scmp.lt.s32.totalorder %s27, 1
        %s409 = scalar_select %p408, %s27, 1
        %s410 = smul.addr %s409, 2
        %s411 = smul.addr %s410, 8
        %s412 = scalar_lea.vmem %s0, %s411
        %p413 = scmp.lt.s32.totalorder %s27, 1
        %s414 = scalar_select %p413, %s27, 1
        %s415 = smul.addr %s414, 2
        %s416 = smul.addr %s415, 8
        %s417 = scalar_lea.vmem %s2, %s416
        %v418 = vld [vmem:[%s412] sm:$0xff]
        %v419 = vld [vmem:[%s412 + $0x8] sm:$0xff]
        %v420 = vld [vmem:[%s417] sm:$0xff]
        %v421 = vld [vmem:[%s417 + $0x8] sm:$0xff]
        %v422 = vld [vmem:[#allocation7] sm:$0xff]
        %v423 = vld [vmem:[%s5] sm:$0x1]
        %v425 = vlaneseq
        %v426 = vshrl.u32 %v425, 7
        %v427 = vsub.s32 0, %v426
        %v428 = vrot.slane %v423, %v427
        %vm430 = vcmask 64512
        %v432 = vsel %vm430, %v420, 0
        %v435 = vsel %vm430, %v421, 0
        %437 = vmatprep.subr.mxu0 0.0
        %438 = vmatpush1.msra.mxu0 %v422
        %439 = vmatprep.subr.mxu0 0.0
        %440 = vmatpush1.msra.mxu0 0.0
        %441 = vmatprep.subr.mxu0 0.0
        %442 = vmatpush1.msra.mxu0 0.0
        %443 = vmatprep.subr.mxu0 0.0
        %444 = vmatpush1.msra.mxu0 0.0
        %445 = vmatprep.subr.mxu0 0.0
        %446 = vmatpush1.msra.mxu0 0.0
        %447 = vmatprep.subr.mxu0 0.0
        %448 = vmatpush1.msra.mxu0 0.0
        %449 = vmatprep.subr.mxu0 0.0
        %450 = vmatpush1.msra.mxu0 0.0
        %451 = vmatprep.subr.mxu0 0.0
        %452 = vmatpush1.msra.mxu0 0.0
        %453 = vmatprep.subr.mxu0 0.0
        %454 = vmatpush1.msra.mxu0 0.0
        %455 = vmatprep.subr.mxu0 0.0
        %456 = vmatpush1.msra.mxu0 0.0
        %457 = vmatprep.subr.mxu0 0.0
        %458 = vmatpush1.msra.mxu0 0.0
        %459 = vmatprep.subr.mxu0 0.0
        %460 = vmatpush1.msra.mxu0 0.0
        %461 = vmatprep.subr.mxu0 0.0
        %462 = vmatpush1.msra.mxu0 0.0
        %463 = vmatprep.subr.mxu0 0.0
        %464 = vmatpush1.msra.mxu0 0.0
        %465 = vmatprep.subr.mxu0 0.0
        %466 = vmatpush1.msra.mxu0 0.0
        %467 = vmatprep.subr.mxu0 0.0
        %468 = vmatpush1.msra.mxu0 0.0
        %469 = vmatprep.subr.mxu0 0.0
        %470 = vmatpush1.msra.mxu0 0.0
        %471 = vmatprep.subr.mxu0 0.0
        %472 = vmatpush1.msra.mxu0 0.0
        %473 = vmatprep.subr.mxu0 0.0
        %474 = vmatpush1.msra.mxu0 0.0
        %475 = vmatprep.subr.mxu0 0.0
        %476 = vmatpush1.msra.mxu0 0.0
        %477 = vmatprep.subr.mxu0 0.0
        %478 = vmatpush1.msra.mxu0 0.0
        %479 = vmatprep.subr.mxu0 0.0
        %480 = vmatpush1.msra.mxu0 0.0
        %481 = vmatprep.subr.mxu0 0.0
        %482 = vmatpush1.msra.mxu0 0.0
        %483 = vmatprep.subr.mxu0 0.0
        %484 = vmatpush1.msra.mxu0 0.0
        %485 = vmatprep.subr.mxu0 0.0
        %486 = vmatpush1.msra.mxu0 0.0
        %487 = vmatprep.subr.mxu0 0.0
        %488 = vmatpush1.msra.mxu0 0.0
        %489 = vmatprep.subr.mxu0 0.0
        %490 = vmatpush1.msra.mxu0 0.0
        %491 = vmatprep.subr.mxu0 0.0
        %492 = vmatpush1.msra.mxu0 0.0
        %493 = vmatprep.subr.mxu0 0.0
        %494 = vmatpush1.msra.mxu0 0.0
        %495 = vmatprep.subr.mxu0 0.0
        %496 = vmatpush1.msra.mxu0 0.0
        %497 = vmatprep.subr.mxu0 0.0
        %498 = vmatpush1.msra.mxu0 0.0
        %499 = vmatprep.subr.mxu0 0.0
        %500 = vmatpush1.msra.mxu0 0.0
        %501 = vmatprep.mubr.f32.mxu0 0.0
        %502 = vmatmul.mubr.f32.gmra.mrb[0].mxu0 %v432
        %v503 = vpop.f32.mrb[0].mxu0
        %v504 = vadd.f32 %v428, %v503
        %v505 = vpop.f32.mrb[0].mxu0
        %506 = vmatprep.mubr.f32.mxu0 0.0
        %507 = vmatmul.mubr.f32.gmra.mrb[0].mxu0 %v435
        %v508 = vpop.f32.mrb[0].mxu0
        %v509 = vadd.f32 %v428, %v508
        %v510 = vpop.f32.mrb[0].mxu0
        %511 = vdwg.mxu0
        %v512 = vld [vmem:[%s7] sm:$0xff]
        %v513 = vld [vmem:[%s8] sm:$0x1]
        %v515 = vlaneseq
        %v516 = vshrl.u32 %v515, 7
        %v517 = vsub.s32 0, %v516
        %v518 = vrot.slane %v513, %v517
        %520 = vmatprep.subr.mxu0 0.0
        %521 = vmatpush1.msra.mxu0 %v512
        %522 = vmatprep.subr.mxu0 0.0
        %523 = vmatpush1.msra.mxu0 0.0
        %524 = vmatprep.subr.mxu0 0.0
        %525 = vmatpush1.msra.mxu0 0.0
        %526 = vmatprep.subr.mxu0 0.0
        %527 = vmatpush1.msra.mxu0 0.0
        %528 = vmatprep.subr.mxu0 0.0
        %529 = vmatpush1.msra.mxu0 0.0
        %530 = vmatprep.subr.mxu0 0.0
        %531 = vmatpush1.msra.mxu0 0.0
        %532 = vmatprep.subr.mxu0 0.0
        %533 = vmatpush1.msra.mxu0 0.0
        %534 = vmatprep.subr.mxu0 0.0
        %535 = vmatpush1.msra.mxu0 0.0
        %536 = vmatprep.subr.mxu0 0.0
        %537 = vmatpush1.msra.mxu0 0.0
        %538 = vmatprep.subr.mxu0 0.0
        %539 = vmatpush1.msra.mxu0 0.0
        %540 = vmatprep.subr.mxu0 0.0
        %541 = vmatpush1.msra.mxu0 0.0
        %542 = vmatprep.subr.mxu0 0.0
        %543 = vmatpush1.msra.mxu0 0.0
        %544 = vmatprep.subr.mxu0 0.0
        %545 = vmatpush1.msra.mxu0 0.0
        %546 = vmatprep.subr.mxu0 0.0
        %547 = vmatpush1.msra.mxu0 0.0
        %548 = vmatprep.subr.mxu0 0.0
        %549 = vmatpush1.msra.mxu0 0.0
        %550 = vmatprep.subr.mxu0 0.0
        %551 = vmatpush1.msra.mxu0 0.0
        %552 = vmatprep.subr.mxu0 0.0
        %553 = vmatpush1.msra.mxu0 0.0
        %554 = vmatprep.subr.mxu0 0.0
        %555 = vmatpush1.msra.mxu0 0.0
        %556 = vmatprep.subr.mxu0 0.0
        %557 = vmatpush1.msra.mxu0 0.0
        %558 = vmatprep.subr.mxu0 0.0
        %559 = vmatpush1.msra.mxu0 0.0
        %560 = vmatprep.subr.mxu0 0.0
        %561 = vmatpush1.msra.mxu0 0.0
        %562 = vmatprep.subr.mxu0 0.0
        %563 = vmatpush1.msra.mxu0 0.0
        %564 = vmatprep.subr.mxu0 0.0
        %565 = vmatpush1.msra.mxu0 0.0
        %566 = vmatprep.subr.mxu0 0.0
        %567 = vmatpush1.msra.mxu0 0.0
        %568 = vmatprep.subr.mxu0 0.0
        %569 = vmatpush1.msra.mxu0 0.0
        %570 = vmatprep.subr.mxu0 0.0
        %571 = vmatpush1.msra.mxu0 0.0
        %572 = vmatprep.subr.mxu0 0.0
        %573 = vmatpush1.msra.mxu0 0.0
        %574 = vmatprep.subr.mxu0 0.0
        %575 = vmatpush1.msra.mxu0 0.0
        %576 = vmatprep.subr.mxu0 0.0
        %577 = vmatpush1.msra.mxu0 0.0
        %578 = vmatprep.subr.mxu0 0.0
        %579 = vmatpush1.msra.mxu0 0.0
        %580 = vmatprep.subr.mxu0 0.0
        %581 = vmatpush1.msra.mxu0 0.0
        %582 = vmatprep.subr.mxu0 0.0
        %583 = vmatpush1.msra.mxu0 0.0
        %584 = vmatprep.mubr.f32.mxu0 0.0
        %585 = vmatmul.mubr.f32.gmra.mrb[0].mxu0 %v432
        %v586 = vpop.f32.mrb[0].mxu0
        %v587 = vadd.f32 %v518, %v586
        %v588 = vpop.f32.mrb[0].mxu0
        %589 = vmatprep.mubr.f32.mxu0 0.0
        %590 = vmatmul.mubr.f32.gmra.mrb[0].mxu0 %v435
        %v591 = vpop.f32.mrb[0].mxu0
        %v592 = vadd.f32 %v518, %v591
        %v593 = vpop.f32.mrb[0].mxu0
        %594 = vdwg.mxu0
        %v595 = vld [vmem:[%s355] sm:$0xff]
        %v596 = vld [vmem:[%s355 + $0x8] sm:$0xff]
        %v597 = vld [vmem:[#allocation5] sm:$0xff]
        %v598 = vld [vmem:[#allocation5 + $0x8] sm:$0xff]
        %v599 = vld [vmem:[#allocation5 + $0x10] sm:$0xff]
        %v600 = vld [vmem:[#allocation5 + $0x18] sm:$0xff]
        %vm601 = vcmask 261120
        %v603 = vsel %vm601, %v595, 0
        %v606 = vsel %vm601, %v596, 0
        %608 = vmatprep.subr.mxu0 0.0
        %609 = vmatpush1.msra.mxu0 %v597
        %610 = vmatprep.subr.mxu0 0.0
        %611 = vmatpush1.msra.mxu0 %v598
        %612 = vmatprep.subr.mxu0 0.0
        %613 = vmatpush1.msra.mxu0 %v599
        %614 = vmatprep.subr.mxu0 0.0
        %615 = vmatpush1.msra.mxu0 %v600
        %616 = vmatprep.subr.mxu0 0.0
        %617 = vmatpush1.msra.mxu0 0.0
        %618 = vmatprep.subr.mxu0 0.0
        %619 = vmatpush1.msra.mxu0 0.0
        %620 = vmatprep.subr.mxu0 0.0
        %621 = vmatpush1.msra.mxu0 0.0
        %622 = vmatprep.subr.mxu0 0.0
        %623 = vmatpush1.msra.mxu0 0.0
        %624 = vmatprep.subr.mxu0 0.0
        %625 = vmatpush1.msra.mxu0 0.0
        %626 = vmatprep.subr.mxu0 0.0
        %627 = vmatpush1.msra.mxu0 0.0
        %628 = vmatprep.subr.mxu0 0.0
        %629 = vmatpush1.msra.mxu0 0.0
        %630 = vmatprep.subr.mxu0 0.0
        %631 = vmatpush1.msra.mxu0 0.0
        %632 = vmatprep.subr.mxu0 0.0
        %633 = vmatpush1.msra.mxu0 0.0
        %634 = vmatprep.subr.mxu0 0.0
        %635 = vmatpush1.msra.mxu0 0.0
        %636 = vmatprep.subr.mxu0 0.0
        %637 = vmatpush1.msra.mxu0 0.0
        %638 = vmatprep.subr.mxu0 0.0
        %639 = vmatpush1.msra.mxu0 0.0
        %640 = vmatprep.subr.mxu0 0.0
        %641 = vmatpush1.msra.mxu0 0.0
        %642 = vmatprep.subr.mxu0 0.0
        %643 = vmatpush1.msra.mxu0 0.0
        %644 = vmatprep.subr.mxu0 0.0
        %645 = vmatpush1.msra.mxu0 0.0
        %646 = vmatprep.subr.mxu0 0.0
        %647 = vmatpush1.msra.mxu0 0.0
        %648 = vmatprep.subr.mxu0 0.0
        %649 = vmatpush1.msra.mxu0 0.0
        %650 = vmatprep.subr.mxu0 0.0
        %651 = vmatpush1.msra.mxu0 0.0
        %652 = vmatprep.subr.mxu0 0.0
        %653 = vmatpush1.msra.mxu0 0.0
        %654 = vmatprep.subr.mxu0 0.0
        %655 = vmatpush1.msra.mxu0 0.0
        %656 = vmatprep.subr.mxu0 0.0
        %657 = vmatpush1.msra.mxu0 0.0
        %658 = vmatprep.subr.mxu0 0.0
        %659 = vmatpush1.msra.mxu0 0.0
        %660 = vmatprep.subr.mxu0 0.0
        %661 = vmatpush1.msra.mxu0 0.0
        %662 = vmatprep.subr.mxu0 0.0
        %663 = vmatpush1.msra.mxu0 0.0
        %664 = vmatprep.subr.mxu0 0.0
        %665 = vmatpush1.msra.mxu0 0.0
        %666 = vmatprep.subr.mxu0 0.0
        %667 = vmatpush1.msra.mxu0 0.0
        %668 = vmatprep.subr.mxu0 0.0
        %669 = vmatpush1.msra.mxu0 0.0
        %670 = vmatprep.subr.mxu0 0.0
        %671 = vmatpush1.msra.mxu0 0.0
        %672 = vmatprep.mubr.f32.mxu0 0.0
        %673 = vmatmul.mubr.f32.gmra.mrb[0].mxu0 %v603
        %v674 = vpop.f32.mrb[0].mxu0
        %v675 = vadd.f32 %v504, %v674
        %v676 = vpop.f32.mrb[0].mxu0
        %677 = vmatprep.mubr.f32.mxu0 0.0
        %678 = vmatmul.mubr.f32.gmra.mrb[0].mxu0 %v606
        %v679 = vpop.f32.mrb[0].mxu0
        %v680 = vadd.f32 %v509, %v679
        %v681 = vpop.f32.mrb[0].mxu0
        %682 = vdwg.mxu0
        %v683 = vld [vmem:[%s6] sm:$0xff]
        %v684 = vld [vmem:[%s6 + $0x8] sm:$0xff]
        %v685 = vld [vmem:[%s6 + $0x10] sm:$0xff]
        %v686 = vld [vmem:[%s6 + $0x18] sm:$0xff]
        %687 = vmatprep.subr.mxu0 0.0
        %688 = vmatpush1.msra.mxu0 %v683
        %689 = vmatprep.subr.mxu0 0.0
        %690 = vmatpush1.msra.mxu0 %v684
        %691 = vmatprep.subr.mxu0 0.0
        %692 = vmatpush1.msra.mxu0 %v685
        %693 = vmatprep.subr.mxu0 0.0
        %694 = vmatpush1.msra.mxu0 %v686
        %695 = vmatprep.subr.mxu0 0.0
        %696 = vmatpush1.msra.mxu0 0.0
        %697 = vmatprep.subr.mxu0 0.0
        %698 = vmatpush1.msra.mxu0 0.0
        %699 = vmatprep.subr.mxu0 0.0
        %700 = vmatpush1.msra.mxu0 0.0
        %701 = vmatprep.subr.mxu0 0.0
        %702 = vmatpush1.msra.mxu0 0.0
        %703 = vmatprep.subr.mxu0 0.0
        %704 = vmatpush1.msra.mxu0 0.0
        %705 = vmatprep.subr.mxu0 0.0
        %706 = vmatpush1.msra.mxu0 0.0
        %707 = vmatprep.subr.mxu0 0.0
        %708 = vmatpush1.msra.mxu0 0.0
        %709 = vmatprep.subr.mxu0 0.0
        %710 = vmatpush1.msra.mxu0 0.0
        %711 = vmatprep.subr.mxu0 0.0
        %712 = vmatpush1.msra.mxu0 0.0
        %713 = vmatprep.subr.mxu0 0.0
        %714 = vmatpush1.msra.mxu0 0.0
        %715 = vmatprep.subr.mxu0 0.0
        %716 = vmatpush1.msra.mxu0 0.0
        %717 = vmatprep.subr.mxu0 0.0
        %718 = vmatpush1.msra.mxu0 0.0
        %719 = vmatprep.subr.mxu0 0.0
        %720 = vmatpush1.msra.mxu0 0.0
        %721 = vmatprep.subr.mxu0 0.0
        %722 = vmatpush1.msra.mxu0 0.0
        %723 = vmatprep.subr.mxu0 0.0
        %724 = vmatpush1.msra.mxu0 0.0
        %725 = vmatprep.subr.mxu0 0.0
        %726 = vmatpush1.msra.mxu0 0.0
        %727 = vmatprep.subr.mxu0 0.0
        %728 = vmatpush1.msra.mxu0 0.0
        %729 = vmatprep.subr.mxu0 0.0
        %730 = vmatpush1.msra.mxu0 0.0
        %731 = vmatprep.subr.mxu0 0.0
        %732 = vmatpush1.msra.mxu0 0.0
        %733 = vmatprep.subr.mxu0 0.0
        %734 = vmatpush1.msra.mxu0 0.0
        %735 = vmatprep.subr.mxu0 0.0
        %736 = vmatpush1.msra.mxu0 0.0
        %737 = vmatprep.subr.mxu0 0.0
        %738 = vmatpush1.msra.mxu0 0.0
        %739 = vmatprep.subr.mxu0 0.0
        %740 = vmatpush1.msra.mxu0 0.0
        %741 = vmatprep.subr.mxu0 0.0
        %742 = vmatpush1.msra.mxu0 0.0
        %743 = vmatprep.subr.mxu0 0.0
        %744 = vmatpush1.msra.mxu0 0.0
        %745 = vmatprep.subr.mxu0 0.0
        %746 = vmatpush1.msra.mxu0 0.0
        %747 = vmatprep.subr.mxu0 0.0
        %748 = vmatpush1.msra.mxu0 0.0
        %749 = vmatprep.subr.mxu0 0.0
        %750 = vmatpush1.msra.mxu0 0.0
        %751 = vmatprep.mubr.f32.mxu0 0.0
        %752 = vmatmul.mubr.f32.gmra.mrb[0].mxu0 %v603
        %v753 = vpop.f32.mrb[0].mxu0
        %v754 = vadd.f32 0.0, %v753
        %v755 = vpop.f32.mrb[0].mxu0
        %756 = vmatprep.mubr.f32.mxu0 0.0
        %757 = vmatmul.mubr.f32.gmra.mrb[0].mxu0 %v606
        %v758 = vpop.f32.mrb[0].mxu0
        %v759 = vadd.f32 0.0, %v758
        %v760 = vpop.f32.mrb[0].mxu0
        %761 = vdwg.mxu0
        %vm762 = vcmask 130048
        %v764 = vsel %vm762, %v418, 0
        %v767 = vsel %vm762, %v419, 0
        %769 = vmatprep.subr.mxu0 0.0
        %770 = vmatpush1.msra.mxu0 %v675
        %771 = vmatprep.subr.mxu0 0.0
        %772 = vmatpush1.msra.mxu0 %v680
        %773 = vmatprep.subr.mxu0 0.0
        %774 = vmatpush1.msra.mxu0 0.0
        %775 = vmatprep.subr.mxu0 0.0
        %776 = vmatpush1.msra.mxu0 0.0
        %777 = vmatprep.subr.mxu0 0.0
        %778 = vmatpush1.msra.mxu0 0.0
        %779 = vmatprep.subr.mxu0 0.0
        %780 = vmatpush1.msra.mxu0 0.0
        %781 = vmatprep.subr.mxu0 0.0
        %782 = vmatpush1.msra.mxu0 0.0
        %783 = vmatprep.subr.mxu0 0.0
        %784 = vmatpush1.msra.mxu0 0.0
        %785 = vmatprep.subr.mxu0 0.0
        %786 = vmatpush1.msra.mxu0 0.0
        %787 = vmatprep.subr.mxu0 0.0
        %788 = vmatpush1.msra.mxu0 0.0
        %789 = vmatprep.subr.mxu0 0.0
        %790 = vmatpush1.msra.mxu0 0.0
        %791 = vmatprep.subr.mxu0 0.0
        %792 = vmatpush1.msra.mxu0 0.0
        %793 = vmatprep.subr.mxu0 0.0
        %794 = vmatpush1.msra.mxu0 0.0
        %795 = vmatprep.subr.mxu0 0.0
        %796 = vmatpush1.msra.mxu0 0.0
        %797 = vmatprep.subr.mxu0 0.0
        %798 = vmatpush1.msra.mxu0 0.0
        %799 = vmatprep.subr.mxu0 0.0
        %800 = vmatpush1.msra.mxu0 0.0
        %801 = vmatprep.subr.mxu0 0.0
        %802 = vmatpush1.msra.mxu0 0.0
        %803 = vmatprep.subr.mxu0 0.0
        %804 = vmatpush1.msra.mxu0 0.0
        %805 = vmatprep.subr.mxu0 0.0
        %806 = vmatpush1.msra.mxu0 0.0
        %807 = vmatprep.subr.mxu0 0.0
        %808 = vmatpush1.msra.mxu0 0.0
        %809 = vmatprep.subr.mxu0 0.0
        %810 = vmatpush1.msra.mxu0 0.0
        %811 = vmatprep.subr.mxu0 0.0
        %812 = vmatpush1.msra.mxu0 0.0
        %813 = vmatprep.subr.mxu0 0.0
        %814 = vmatpush1.msra.mxu0 0.0
        %815 = vmatprep.subr.mxu0 0.0
        %816 = vmatpush1.msra.mxu0 0.0
        %817 = vmatprep.subr.mxu0 0.0
        %818 = vmatpush1.msra.mxu0 0.0
        %819 = vmatprep.subr.mxu0 0.0
        %820 = vmatpush1.msra.mxu0 0.0
        %821 = vmatprep.subr.mxu0 0.0
        %822 = vmatpush1.msra.mxu0 0.0
        %823 = vmatprep.subr.mxu0 0.0
        %824 = vmatpush1.msra.mxu0 0.0
        %825 = vmatprep.subr.mxu0 0.0
        %826 = vmatpush1.msra.mxu0 0.0
        %827 = vmatprep.subr.mxu0 0.0
        %828 = vmatpush1.msra.mxu0 0.0
        %829 = vmatprep.subr.mxu0 0.0
        %830 = vmatpush1.msra.mxu0 0.0
        %831 = vmatprep.subr.mxu0 0.0
        %832 = vmatpush1.msra.mxu0 0.0
        %833 = vmatprep.mubr.f32.mxu0 0.0
        %834 = vmatmul.mubr.f32.gmra.mrb[0].mxu0 %v764
        %v835 = vpop.f32.mrb[0].mxu0
        %v836 = vadd.f32 %v754, %v835
        %v837 = vpop.f32.mrb[0].mxu0
        %838 = vmatprep.mubr.f32.mxu0 0.0
        %839 = vmatmul.mubr.f32.gmra.mrb[0].mxu0 %v767
        %v840 = vpop.f32.mrb[0].mxu0
        %v841 = vadd.f32 %v759, %v840
        %v842 = vpop.f32.mrb[0].mxu0
        %843 = vdwg.mxu0
        %v844 = vadd.f32 %v836, %v587
        %v845 = vadd.f32 %v841, %v592
        %v846 = vtanh.pop %v844
        %v847 = vtanh.pop %v845
        %v849 = vsel %vm601, %v846, 0
        %v852 = vsel %vm601, %v847, 0
        %854 = vmatprep.subr.mxu0 0.0
        %855 = vmatpush1.msra.mxu0 %v597
        %856 = vmatprep.subr.mxu0 0.0
        %857 = vmatpush1.msra.mxu0 %v598
        %858 = vmatprep.subr.mxu0 0.0
        %859 = vmatpush1.msra.mxu0 %v599
        %860 = vmatprep.subr.mxu0 0.0
        %861 = vmatpush1.msra.mxu0 %v600
        %862 = vmatprep.subr.mxu0 0.0
        %863 = vmatpush1.msra.mxu0 0.0
        %864 = vmatprep.subr.mxu0 0.0
        %865 = vmatpush1.msra.mxu0 0.0
        %866 = vmatprep.subr.mxu0 0.0
        %867 = vmatpush1.msra.mxu0 0.0
        %868 = vmatprep.subr.mxu0 0.0
        %869 = vmatpush1.msra.mxu0 0.0
        %870 = vmatprep.subr.mxu0 0.0
        %871 = vmatpush1.msra.mxu0 0.0
        %872 = vmatprep.subr.mxu0 0.0
        %873 = vmatpush1.msra.mxu0 0.0
        %874 = vmatprep.subr.mxu0 0.0
        %875 = vmatpush1.msra.mxu0 0.0
        %876 = vmatprep.subr.mxu0 0.0
        %877 = vmatpush1.msra.mxu0 0.0
        %878 = vmatprep.subr.mxu0 0.0
        %879 = vmatpush1.msra.mxu0 0.0
        %880 = vmatprep.subr.mxu0 0.0
        %881 = vmatpush1.msra.mxu0 0.0
        %882 = vmatprep.subr.mxu0 0.0
        %883 = vmatpush1.msra.mxu0 0.0
        %884 = vmatprep.subr.mxu0 0.0
        %885 = vmatpush1.msra.mxu0 0.0
        %886 = vmatprep.subr.mxu0 0.0
        %887 = vmatpush1.msra.mxu0 0.0
        %888 = vmatprep.subr.mxu0 0.0
        %889 = vmatpush1.msra.mxu0 0.0
        %890 = vmatprep.subr.mxu0 0.0
        %891 = vmatpush1.msra.mxu0 0.0
        %892 = vmatprep.subr.mxu0 0.0
        %893 = vmatpush1.msra.mxu0 0.0
        %894 = vmatprep.subr.mxu0 0.0
        %895 = vmatpush1.msra.mxu0 0.0
        %896 = vmatprep.subr.mxu0 0.0
        %897 = vmatpush1.msra.mxu0 0.0
        %898 = vmatprep.subr.mxu0 0.0
        %899 = vmatpush1.msra.mxu0 0.0
        %900 = vmatprep.subr.mxu0 0.0
        %901 = vmatpush1.msra.mxu0 0.0
        %902 = vmatprep.subr.mxu0 0.0
        %903 = vmatpush1.msra.mxu0 0.0
        %904 = vmatprep.subr.mxu0 0.0
        %905 = vmatpush1.msra.mxu0 0.0
        %906 = vmatprep.subr.mxu0 0.0
        %907 = vmatpush1.msra.mxu0 0.0
        %908 = vmatprep.subr.mxu0 0.0
        %909 = vmatpush1.msra.mxu0 0.0
        %910 = vmatprep.subr.mxu0 0.0
        %911 = vmatpush1.msra.mxu0 0.0
        %912 = vmatprep.subr.mxu0 0.0
        %913 = vmatpush1.msra.mxu0 0.0
        %914 = vmatprep.subr.mxu0 0.0
        %915 = vmatpush1.msra.mxu0 0.0
        %916 = vmatprep.subr.mxu0 0.0
        %917 = vmatpush1.msra.mxu0 0.0
        %918 = vmatprep.mubr.f32.mxu0 0.0
        %919 = vmatmul.mubr.f32.gmra.mrb[0].mxu0 %v849
        %v920 = vpop.f32.mrb[0].mxu0
        %v921 = vadd.f32 %v504, %v920
        %v922 = vpop.f32.mrb[0].mxu0
        %923 = vmatprep.mubr.f32.mxu0 0.0
        %924 = vmatmul.mubr.f32.gmra.mrb[0].mxu0 %v852
        %v925 = vpop.f32.mrb[0].mxu0
        %v926 = vadd.f32 %v509, %v925
        %v927 = vpop.f32.mrb[0].mxu0
        %928 = vdwg.mxu0
        %929 = vmatprep.subr.mxu0 0.0
        %930 = vmatpush1.msra.mxu0 %v683
        %931 = vmatprep.subr.mxu0 0.0
        %932 = vmatpush1.msra.mxu0 %v684
        %933 = vmatprep.subr.mxu0 0.0
        %934 = vmatpush1.msra.mxu0 %v685
        %935 = vmatprep.subr.mxu0 0.0
        %936 = vmatpush1.msra.mxu0 %v686
        %937 = vmatprep.subr.mxu0 0.0
        %938 = vmatpush1.msra.mxu0 0.0
        %939 = vmatprep.subr.mxu0 0.0
        %940 = vmatpush1.msra.mxu0 0.0
        %941 = vmatprep.subr.mxu0 0.0
        %942 = vmatpush1.msra.mxu0 0.0
        %943 = vmatprep.subr.mxu0 0.0
        %944 = vmatpush1.msra.mxu0 0.0
        %945 = vmatprep.subr.mxu0 0.0
        %946 = vmatpush1.msra.mxu0 0.0
        %947 = vmatprep.subr.mxu0 0.0
        %948 = vmatpush1.msra.mxu0 0.0
        %949 = vmatprep.subr.mxu0 0.0
        %950 = vmatpush1.msra.mxu0 0.0
        %951 = vmatprep.subr.mxu0 0.0
        %952 = vmatpush1.msra.mxu0 0.0
        %953 = vmatprep.subr.mxu0 0.0
        %954 = vmatpush1.msra.mxu0 0.0
        %955 = vmatprep.subr.mxu0 0.0
        %956 = vmatpush1.msra.mxu0 0.0
        %957 = vmatprep.subr.mxu0 0.0
        %958 = vmatpush1.msra.mxu0 0.0
        %959 = vmatprep.subr.mxu0 0.0
        %960 = vmatpush1.msra.mxu0 0.0
        %961 = vmatprep.subr.mxu0 0.0
        %962 = vmatpush1.msra.mxu0 0.0
        %963 = vmatprep.subr.mxu0 0.0
        %964 = vmatpush1.msra.mxu0 0.0
        %965 = vmatprep.subr.mxu0 0.0
        %966 = vmatpush1.msra.mxu0 0.0
        %967 = vmatprep.subr.mxu0 0.0
        %968 = vmatpush1.msra.mxu0 0.0
        %969 = vmatprep.subr.mxu0 0.0
        %970 = vmatpush1.msra.mxu0 0.0
        %971 = vmatprep.subr.mxu0 0.0
        %972 = vmatpush1.msra.mxu0 0.0
        %973 = vmatprep.subr.mxu0 0.0
        %974 = vmatpush1.msra.mxu0 0.0
        %975 = vmatprep.subr.mxu0 0.0
        %976 = vmatpush1.msra.mxu0 0.0
        %977 = vmatprep.subr.mxu0 0.0
        %978 = vmatpush1.msra.mxu0 0.0
        %979 = vmatprep.subr.mxu0 0.0
        %980 = vmatpush1.msra.mxu0 0.0
        %981 = vmatprep.subr.mxu0 0.0
        %982 = vmatpush1.msra.mxu0 0.0
        %983 = vmatprep.subr.mxu0 0.0
        %984 = vmatpush1.msra.mxu0 0.0
        %985 = vmatprep.subr.mxu0 0.0
        %986 = vmatpush1.msra.mxu0 0.0
        %987 = vmatprep.subr.mxu0 0.0
        %988 = vmatpush1.msra.mxu0 0.0
        %989 = vmatprep.subr.mxu0 0.0
        %990 = vmatpush1.msra.mxu0 0.0
        %991 = vmatprep.subr.mxu0 0.0
        %992 = vmatpush1.msra.mxu0 0.0
        %993 = vmatprep.mubr.f32.mxu0 0.0
        %994 = vmatmul.mubr.f32.gmra.mrb[0].mxu0 %v849
        %v995 = vpop.f32.mrb[0].mxu0
        %v996 = vadd.f32 0.0, %v995
        %v997 = vpop.f32.mrb[0].mxu0
        %998 = vmatprep.mubr.f32.mxu0 0.0
        %999 = vmatmul.mubr.f32.gmra.mrb[0].mxu0 %v852
        %v1000 = vpop.f32.mrb[0].mxu0
        %v1001 = vadd.f32 0.0, %v1000
        %v1002 = vpop.f32.mrb[0].mxu0
        %1003 = vdwg.mxu0
        %1004 = vmatprep.subr.mxu0 0.0
        %1005 = vmatpush1.msra.mxu0 %v921
        %1006 = vmatprep.subr.mxu0 0.0
        %1007 = vmatpush1.msra.mxu0 %v926
        %1008 = vmatprep.subr.mxu0 0.0
        %1009 = vmatpush1.msra.mxu0 0.0
        %1010 = vmatprep.subr.mxu0 0.0
        %1011 = vmatpush1.msra.mxu0 0.0
        %1012 = vmatprep.subr.mxu0 0.0
        %1013 = vmatpush1.msra.mxu0 0.0
        %1014 = vmatprep.subr.mxu0 0.0
        %1015 = vmatpush1.msra.mxu0 0.0
        %1016 = vmatprep.subr.mxu0 0.0
        %1017 = vmatpush1.msra.mxu0 0.0
        %1018 = vmatprep.subr.mxu0 0.0
        %1019 = vmatpush1.msra.mxu0 0.0
        %1020 = vmatprep.subr.mxu0 0.0
        %1021 = vmatpush1.msra.mxu0 0.0
        %1022 = vmatprep.subr.mxu0 0.0
        %1023 = vmatpush1.msra.mxu0 0.0
        %1024 = vmatprep.subr.mxu0 0.0
        %1025 = vmatpush1.msra.mxu0 0.0
        %1026 = vmatprep.subr.mxu0 0.0
        %1027 = vmatpush1.msra.mxu0 0.0
        %1028 = vmatprep.subr.mxu0 0.0
        %1029 = vmatpush1.msra.mxu0 0.0
        %1030 = vmatprep.subr.mxu0 0.0
        %1031 = vmatpush1.msra.mxu0 0.0
        %1032 = vmatprep.subr.mxu0 0.0
        %1033 = vmatpush1.msra.mxu0 0.0
        %1034 = vmatprep.subr.mxu0 0.0
        %1035 = vmatpush1.msra.mxu0 0.0
        %1036 = vmatprep.subr.mxu0 0.0
        %1037 = vmatpush1.msra.mxu0 0.0
        %1038 = vmatprep.subr.mxu0 0.0
        %1039 = vmatpush1.msra.mxu0 0.0
        %1040 = vmatprep.subr.mxu0 0.0
        %1041 = vmatpush1.msra.mxu0 0.0
        %1042 = vmatprep.subr.mxu0 0.0
        %1043 = vmatpush1.msra.mxu0 0.0
        %1044 = vmatprep.subr.mxu0 0.0
        %1045 = vmatpush1.msra.mxu0 0.0
        %1046 = vmatprep.subr.mxu0 0.0
        %1047 = vmatpush1.msra.mxu0 0.0
        %1048 = vmatprep.subr.mxu0 0.0
        %1049 = vmatpush1.msra.mxu0 0.0
        %1050 = vmatprep.subr.mxu0 0.0
        %1051 = vmatpush1.msra.mxu0 0.0
        %1052 = vmatprep.subr.mxu0 0.0
        %1053 = vmatpush1.msra.mxu0 0.0
        %1054 = vmatprep.subr.mxu0 0.0
        %1055 = vmatpush1.msra.mxu0 0.0
        %1056 = vmatprep.subr.mxu0 0.0
        %1057 = vmatpush1.msra.mxu0 0.0
        %1058 = vmatprep.subr.mxu0 0.0
        %1059 = vmatpush1.msra.mxu0 0.0
        %1060 = vmatprep.subr.mxu0 0.0
        %1061 = vmatpush1.msra.mxu0 0.0
        %1062 = vmatprep.subr.mxu0 0.0
        %1063 = vmatpush1.msra.mxu0 0.0
        %1064 = vmatprep.subr.mxu0 0.0
        %1065 = vmatpush1.msra.mxu0 0.0
        %1066 = vmatprep.subr.mxu0 0.0
        %1067 = vmatpush1.msra.mxu0 0.0
        %1068 = vmatprep.mubr.f32.mxu0 0.0
        %1069 = vmatmul.mubr.f32.gmra.mrb[0].mxu0 %v764
        %v1070 = vpop.f32.mrb[0].mxu0
        %v1071 = vadd.f32 %v996, %v1070
        %v1072 = vpop.f32.mrb[0].mxu0
        %1073 = vmatprep.mubr.f32.mxu0 0.0
        %1074 = vmatmul.mubr.f32.gmra.mrb[0].mxu0 %v767
        %v1075 = vpop.f32.mrb[0].mxu0
        %v1076 = vadd.f32 %v1001, %v1075
        %v1077 = vpop.f32.mrb[0].mxu0
        %1078 = vdwg.mxu0
        %v1079 = vadd.f32 %v1071, %v587
        %v1080 = vadd.f32 %v1076, %v592
        %v1081 = vtanh.pop %v1079
        %v1082 = vtanh.pop %v1080
        %1083 = vst.msk [vmem:[%s407] sm:$0xff] %vm601, %v1081
        %1084 = vst.msk [vmem:[%s407 + $0x8] sm:$0xff] %vm601, %v1082
        %s1085 = sand.u32 %s239, 1
        %s1086 = scalar_lea.sflag [#allocation4], %s1085
        %s1087 = sand.u32 %s239, 1
        %s1088 = smul.addr %s1087, 16
        %s1089 = scalar_lea.vmem [#allocation8], %s1088
        // Predicated region
        $region69: #{tpu_custom_call.1} parent=55 // pred_check
          %p1090 = pneg %p249
        $region70: #{tpu_custom_call.1} parent=55 // pred_check_branch
          %1092 = sbr.rel (%p1090) target = $region72
        $region71: #{tpu_custom_call.1} parent=55 // pred_region
          %s1094 = ssub.s32 256, 256
          %1095 = vsyncadd %s1086, %s1094
          %s1096 = smul.addr %s27, 2
          %s1097 = smul.addr %s1096, 128
          %s1098 = scalar_lea.hbm %s9, %s1097
          %s1099 = sshll.u32 %s1089, 4
          %s1100 = int_to_ptr.vmem [resolvable:$true] %s1099
          %1105 = dma.vmem_to_hbm [thread:$0]  %s1100, 256, %s1098, %s1086, 128, 128, 8
        $region72: #{tpu_custom_call.1} parent=55 // pred_fallthru
          _
      $region56: #{tpu_custom_call.1} parent=5 // pred_fallthru
        _
      %p1106 = scmp.le.s32.totalorder 2, %s22
      // Predicated region
      $region73: #{tpu_custom_call.1} parent=5 // pred_check
        %p1107 = pneg %p1106
      $region74: #{tpu_custom_call.1} parent=5 // pred_check_branch
        %1109 = sbr.rel (%p1107) target = $region76
      $region75: #{tpu_custom_call.1} parent=5 // pred_region
        %s1110 = ssub.s32 %s22, 2
        // Predicated region
        $region77: #{tpu_custom_call.1} parent=75 // pred_check
          %p1111 = pneg %p255
        $region78: #{tpu_custom_call.1} parent=75 // pred_check_branch
          %1113 = sbr.rel (%p1111) target = $region80
        $region79: #{tpu_custom_call.1} parent=75 // pred_region
          %s1114 = sand.u32 %s240, 1
          %s1115 = scalar_lea.sflag [#allocation4], %s1114
          %s1116 = sand.u32 %s240, 1
          %s1117 = smul.addr %s1116, 16
          %s1118 = scalar_lea.vmem [#allocation8], %s1117
          %1119 = dma.done %s1115, 256
        $region80: #{tpu_custom_call.1} parent=75 // pred_fallthru
          _
      $region76: #{tpu_custom_call.1} parent=5 // pred_fallthru
        _
    $region6: #{tpu_custom_call.1} parent=1 // loop_footer
      %s26 = sadd.s32 1, %s22
    $region7: #{tpu_custom_call.1} parent=1 // loop_footer_branch
      %21 = sbr.rel target = $region3
    $region8: #{tpu_custom_call.1} parent=1 // loop_exit
      _
    %1120 = vsyncpa [#allocation3], 1
    %s1121 = scalar_lea.sflag [#allocation3], 1
    %1122 = vsyncpa %s1121, 1
    %1123 = vsyncpa [#allocation6], 1
    %1124 = vsyncpa [#allocation4], 1
    %s1125 = scalar_lea.sflag [#allocation4], 1
    %1126 = vsyncpa %s1125, 1

</llo_original>
